<compile_context>
chip_gen: v5e
topology: v5e:2x2
jax: 0.10.0
libtpu: 0.0.40
codegen_flags: <defaults>
</compile_context>

<pallas_src>
import jax
import jax.numpy as jnp
from jax.experimental import pallas as pl
from jax.experimental.pallas import tpu as pltpu


# --------------------------------------------------------------------------- kernel
def autoencoder_kernel(x_ref, w_enc_ref, b_enc_ref, w_dec_ref, b_dec_ref, out_ref):
    # Collapsed (and lane-packed) encoder: one matmul + bias, then ReLU.
    x = x_ref[...]
    h = jnp.dot(x, w_enc_ref[...], preferred_element_type=jnp.float32) + b_enc_ref[...]
    h = jnp.maximum(h, 0.0)                                   # ReLU(inplace=True)
    # Collapsed (and lane-packed) decoder: one matmul + bias, then Tanh.
    h = jnp.dot(h, w_dec_ref[...], preferred_element_type=jnp.float32) + b_dec_ref[...]
    out_ref[...] = jnp.tanh(h)


# --------------------------------------------------------------------- param helpers
def _weight_norm_effective(v, g):
    # PyTorch weight_norm(dim=0) on Linear: w[o, i] = g[o] * v[o, i] / ||v[o, :]||
    norm = jnp.sqrt(jnp.sum(v * v, axis=1, keepdims=True))
    return g[:, None] * v / norm


def init_params(key, input_size):
    """Deterministically initialize (v, g, b) for the 6 weight-normed Linears."""
    dims = [(input_size, 40), (40, 30), (30, 20),
            (20, 30), (30, 40), (40, input_size)]
    params = []
    for (fan_in, fan_out) in dims:
        key, kv, kg, kb = jax.random.split(key, 4)
        bound = 1.0 / jnp.sqrt(fan_in)
        v = jax.random.uniform(kv, (fan_out, fan_in), jnp.float32, -bound, bound)
        g = jax.random.uniform(kg, (fan_out,), jnp.float32, 0.5, 1.5)
        b = jax.random.uniform(kb, (fan_out,), jnp.float32, -bound, bound)
        params.append((v, g, b))
    return params


def _collapse_params(params):
    """Fold weight_norm and collapse the 3 encoder / 3 decoder Linears into one each.

    Returns (w_enc (F,20), b_enc (1,20), w_dec (20,F), b_dec (1,F)) in the
    x @ W + b convention used by the kernel.
    """
    A = []   # per-layer (in, out) effective weights
    bs = []  # per-layer (1, out) biases
    for (v, g, b) in params:
        A.append(_weight_norm_effective(v, g).T)
        bs.append(b.reshape(1, -1))

    w_enc = A[0] @ A[1] @ A[2]
    b_enc = bs[0] @ A[1] @ A[2] + bs[1] @ A[2] + bs[2]
    w_dec = A[3] @ A[4] @ A[5]
    b_dec = bs[3] @ A[4] @ A[5] + bs[4] @ A[5] + bs[5]
    return w_enc, b_enc, w_dec, b_dec


def _pack_factor(F):
    """Samples per 128-lane row (lane-dense packing)."""
    if F < 128 and 128 % F == 0:
        return 128 // F
    return 1


def _block_diag(w, P):
    """(K, N) -> (P*K, P*N) block-diagonal replication (exact: off-blocks are 0)."""
    K, N = w.shape
    out = jnp.zeros((P * K, P * N), w.dtype)
    for p in range(P):
        out = out.at[p * K:(p + 1) * K, p * N:(p + 1) * N].set(w)
    return out


def prepare_forward_params(params, input_size):
    """One-time prep (run when params change, NOT per forward call):
    weight-norm fold + 3+3 layer collapse + lane-dense block-diagonal packing."""
    w_enc, b_enc, w_dec, b_dec = _collapse_params(params)
    F = w_enc.shape[0]
    assert F == input_size
    P = _pack_factor(F)
    if P > 1:
        w_enc = _block_diag(w_enc, P)          # (P*F, P*H)
        w_dec = _block_diag(w_dec, P)          # (P*H, P*F)
        b_enc = jnp.tile(b_enc, (1, P))        # (1, P*H)
        b_dec = jnp.tile(b_dec, (1, P))        # (1, P*F)
    return (jnp.asarray(w_enc, jnp.float32), jnp.asarray(b_enc, jnp.float32),
            jnp.asarray(w_dec, jnp.float32), jnp.asarray(b_dec, jnp.float32))


# ----------------------------------------------------------------------- tile sizing
def _vmem_capacity_bytes():
    try:
        return int(pltpu.get_tpu_info().vmem_capacity_bytes)
    except Exception:
        return 64 * 1024 * 1024   # conservative default (v7x); v5e/v6e have 128 MiB


def _round_up(x, m):
    return ((x + m - 1) // m) * m


# ------------------------------------------------------------------------- forward
@jax.jit
def autoencoder_forward(x, prepared):
    """x: (B, input_size) float32.  prepared: output of prepare_forward_params()."""
    w_enc, b_enc, w_dec, b_dec = prepared
    B, F = x.shape
    P = _pack_factor(F)
    assert w_enc.shape[0] == P * F, "prepared params do not match input feature size"

    # Pack P samples per 128-lane row (free contiguous reshape); pad B if needed.
    pad = (-B) % P
    if pad:
        x = jnp.concatenate([x, jnp.zeros((pad, F), x.dtype)], axis=0)
    Bp = (B + pad) // P
    Fp = P * F
    xp = x.reshape(Bp, Fp)

    # Per-generation VMEM-derived batch tile:
    #   4 double-buffered (x in + out) buffers of tile_b * Fp * 4B each must fit the
    #   tile budget (~3/4 of physical VMEM: ~48 MiB on v7x, ~96 MiB on v5e/v6e),
    #   and for large B keep >= ~4 grid steps so both v7x TensorCores get work.
    row_bytes = Fp * 4
    cap = _vmem_capacity_bytes()
    tile_budget = (cap * 3) // 4
    max_tile = max(8, (tile_budget // (4 * row_bytes)) // 8 * 8)
    quarter = max(8, _round_up(-(-Bp // 4), 8))
    tile_b = min(max_tile, quarter)
    if tile_b >= Bp:
        tile_b = Bp                     # single full-extent block (small batches)
    grid = (pl.cdiv(Bp, tile_b),)

    vmem_limit = min(cap - (4 << 20), tile_budget + (8 << 20))

    resident = lambda i: (0, 0)  # weights/biases: same block every step -> VMEM-resident
    out = pl.pallas_call(
        autoencoder_kernel,
        out_shape=jax.ShapeDtypeStruct((Bp, Fp), jnp.float32),
        grid=grid,
        in_specs=[
            pl.BlockSpec((tile_b, Fp), lambda i: (i, 0)),   # packed x, streamed over batch
            pl.BlockSpec(w_enc.shape, resident),            # packed encoder weight
            pl.BlockSpec(b_enc.shape, resident),            # packed encoder bias
            pl.BlockSpec(w_dec.shape, resident),            # packed decoder weight
            pl.BlockSpec(b_dec.shape, resident),            # packed decoder bias
        ],
        out_specs=pl.BlockSpec((tile_b, Fp), lambda i: (i, 0)),
        compiler_params=pltpu.CompilerParams(
            dimension_semantics=("parallel",),
            vmem_limit_bytes=int(vmem_limit),
        ),
    )(xp, w_enc, b_enc, w_dec, b_dec)

    out = out.reshape(B + pad, F)
    if pad:
        out = out[:B]
    return out


# ------------------------------------------------------------------------ reference
def reference_forward(x, params):
    """Pure-JAX reference mirroring the PyTorch module layer-by-layer (uncollapsed)."""
    h = x
    for i in range(3):                       # encoder
        v, g, b = params[i]
        h = h @ _weight_norm_effective(v, g).T + b
    h = jnp.maximum(h, 0.0)
    for i in range(3, 6):                    # decoder
        v, g, b = params[i]
        h = h @ _weight_norm_effective(v, g).T + b
    return jnp.tanh(h)


if __name__ == "__main__":
    input_size = 32
    batch = 8

    key = jax.random.PRNGKey(0)
    key, kx = jax.random.split(key)
    x = jax.random.normal(kx, (batch, input_size), jnp.float32)
    params = init_params(key, input_size)

    # One-time param prep (hoisted out of the per-call hot path).
    prepared = jax.tree_util.tree_map(jax.block_until_ready,
                                      prepare_forward_params(params, input_size))

    out = jax.block_until_ready(autoencoder_forward(x, prepared))
    ref = reference_forward(x, params)
    assert out.shape == (batch, input_size)
    assert jnp.allclose(out, ref, atol=1e-5, rtol=1e-5), "mismatch vs reference (small)"

    # Also exercise the gridded (multi-tile, lane-packed) path with a larger batch.
    key, kx2 = jax.random.split(key)
    x_big = jax.random.normal(kx2, (1024, input_size), jnp.float32)
    out_big = jax.block_until_ready(autoencoder_forward(x_big, prepared))
    ref_big = reference_forward(x_big, params)
    assert jnp.allclose(out_big, ref_big, atol=1e-5, rtol=1e-5), "mismatch vs reference (grid)"

    print("KERNEL_OK")
</pallas_src>

<mosaic_0001>
module attributes {stable_mosaic.version = 11 : i64} {
  func.func @autoencoder_kernel(%arg0: i32, %arg1: memref<2x128xf32, #tpu.memory_space<vmem>>, %arg2: memref<128x80xf32, #tpu.memory_space<vmem>>, %arg3: memref<1x80xf32, #tpu.memory_space<vmem>>, %arg4: memref<80x128xf32, #tpu.memory_space<vmem>>, %arg5: memref<1x128xf32, #tpu.memory_space<vmem>>, %arg6: memref<2x128xf32, #tpu.memory_space<vmem>>) attributes {dimension_semantics = [#tpu.dimension_semantics<parallel>], iteration_bounds = array<i64: 1>, scalar_prefetch = 0 : i64, scratch_operands = 0 : i64, tpu.core_type = #tpu.core_type<tc>, window_params = [{transform_indices = @transform_0, window_bounds = array<i64: 2, 128>}, {pipeline_mode = #tpu.pipeline_mode<synchronous>, transform_indices = @transform_1, window_bounds = array<i64: 128, 80>}, {pipeline_mode = #tpu.pipeline_mode<synchronous>, transform_indices = @transform_2, window_bounds = array<i64: 1, 80>}, {pipeline_mode = #tpu.pipeline_mode<synchronous>, transform_indices = @transform_3, window_bounds = array<i64: 80, 128>}, {pipeline_mode = #tpu.pipeline_mode<synchronous>, transform_indices = @transform_4, window_bounds = array<i64: 1, 128>}, {transform_indices = @transform_5, window_bounds = array<i64: 2, 128>}]} {
    %c0 = arith.constant 0 : index
    %c0_0 = arith.constant 0 : index
    %0 = vector.load %arg1[%c0, %c0_0] : memref<2x128xf32, #tpu.memory_space<vmem>>, vector<2x128xf32>
    %c0_1 = arith.constant 0 : index
    %c0_2 = arith.constant 0 : index
    %1 = vector.load %arg2[%c0_1, %c0_2] : memref<128x80xf32, #tpu.memory_space<vmem>>, vector<128x80xf32>
    %cst = arith.constant dense<0.000000e+00> : vector<2x80xf32>
    %2 = tpu.matmul %0, %1, %cst {dimension_numbers = #tpu.dot_dimension_numbers<[1], [0], [0], [1], [0, 0, 1, 1], [], []>} : vector<2x128xf32>, vector<128x80xf32>, vector<2x80xf32> -> vector<2x80xf32>
    %c0_3 = arith.constant 0 : index
    %c0_4 = arith.constant 0 : index
    %3 = vector.load %arg3[%c0_3, %c0_4] : memref<1x80xf32, #tpu.memory_space<vmem>>, vector<1x80xf32>
    %4 = vector.broadcast %3 : vector<1x80xf32> to vector<2x80xf32>
    %5 = arith.addf %2, %4 : vector<2x80xf32>
    %cst_5 = arith.constant 0.000000e+00 : f32
    %6 = vector.broadcast %cst_5 : f32 to vector<2x80xf32>
    %7 = arith.maximumf %5, %6 : vector<2x80xf32>
    %c0_6 = arith.constant 0 : index
    %c0_7 = arith.constant 0 : index
    %8 = vector.load %arg4[%c0_6, %c0_7] : memref<80x128xf32, #tpu.memory_space<vmem>>, vector<80x128xf32>
    %cst_8 = arith.constant dense<0.000000e+00> : vector<2x128xf32>
    %9 = tpu.matmul %7, %8, %cst_8 {dimension_numbers = #tpu.dot_dimension_numbers<[1], [0], [0], [1], [0, 0, 1, 1], [], []>} : vector<2x80xf32>, vector<80x128xf32>, vector<2x128xf32> -> vector<2x128xf32>
    %c0_9 = arith.constant 0 : index
    %c0_10 = arith.constant 0 : index
    %10 = vector.load %arg5[%c0_9, %c0_10] : memref<1x128xf32, #tpu.memory_space<vmem>>, vector<1x128xf32>
    %11 = vector.broadcast %10 : vector<1x128xf32> to vector<2x128xf32>
    %12 = arith.addf %9, %11 : vector<2x128xf32>
    %13 = math.tanh %12 : vector<2x128xf32>
    %c0_11 = arith.constant 0 : index
    %c0_12 = arith.constant 0 : index
    %14 = vector.load %arg6[%c0_11, %c0_12] : memref<2x128xf32, #tpu.memory_space<vmem>>, vector<2x128xf32>
    tpu.vector_store %arg6[%c0_11, %c0_12], %13 {strides = array<i32>} : memref<2x128xf32, #tpu.memory_space<vmem>>, vector<2x128xf32>,
    return
  }
  func.func @transform_0(%arg0: i32) -> (i32, i32) {
    %c0_i32 = arith.constant 0 : i32
    %c0_i32_0 = arith.constant 0 : i32
    return %arg0, %c0_i32 : i32, i32
  }
  func.func @transform_1(%arg0: i32) -> (i32, i32) {
    %c0_i32 = arith.constant 0 : i32
    %c0_i32_0 = arith.constant 0 : i32
    %c0_i32_1 = arith.constant 0 : i32
    return %c0_i32, %c0_i32_0 : i32, i32
  }
  func.func @transform_2(%arg0: i32) -> (i32, i32) {
    %c0_i32 = arith.constant 0 : i32
    %c0_i32_0 = arith.constant 0 : i32
    %c0_i32_1 = arith.constant 0 : i32
    return %c0_i32, %c0_i32_0 : i32, i32
  }
  func.func @transform_3(%arg0: i32) -> (i32, i32) {
    %c0_i32 = arith.constant 0 : i32
    %c0_i32_0 = arith.constant 0 : i32
    %c0_i32_1 = arith.constant 0 : i32
    return %c0_i32, %c0_i32_0 : i32, i32
  }
  func.func @transform_4(%arg0: i32) -> (i32, i32) {
    %c0_i32 = arith.constant 0 : i32
    %c0_i32_0 = arith.constant 0 : i32
    %c0_i32_1 = arith.constant 0 : i32
    return %c0_i32, %c0_i32_0 : i32, i32
  }
  func.func @transform_5(%arg0: i32) -> (i32, i32) {
    %c0_i32 = arith.constant 0 : i32
    %c0_i32_0 = arith.constant 0 : i32
    return %arg0, %c0_i32 : i32, i32
  }
}

</mosaic_0001>

<llo_original>
// kernel: autoencoder_forward.1
$region0: #{autoencoder_forward.1}
  #allocation0 [shape = 'u32[]', space=smem, size = 0x4, offset = 0x4, fixed_abs, tag = 'smem constant byte address 0x4 - core index']
  #allocation1 [shape = 'u32[72,128]{1,0:T(1,128)}', space=vmem, size = 0x9000, scoped, tag = 'internal scratch']
  %s0 = inlined_call_operand.vmem [shape: f32[2,128], index: 0, kind: input, shape index: {}]
  %s1 = inlined_call_operand.vmem [shape: f32[128,80], index: 1, kind: input, shape index: {}]
  %s2 = inlined_call_operand.vmem [shape: f32[1,80], index: 2, kind: input, shape index: {}]
  %s3 = inlined_call_operand.vmem [shape: f32[80,128], index: 3, kind: input, shape index: {}]
  %s4 = inlined_call_operand.vmem [shape: f32[1,128], index: 4, kind: input, shape index: {}]
  %s5 = inlined_call_operand.vmem [shape: f32[2,128], index: 5, kind: output, shape index: {}]
  %s6 = sld [smem:[#allocation0]]
  $region30: #{autoencoder_forward.1} parent=0
    _
  %s8 = ssub.s32 1, %s6
  %s9 = scalar_select 0, %s8, %s6
  // Predicated region
  $region2: #{autoencoder_forward.1} parent=0 // pred_check
    _
  $region3: #{autoencoder_forward.1} parent=0 // pred_check_branch
    %11 = sbr.rel (0) target = $region5
  $region4: #{autoencoder_forward.1} parent=0 // pred_region
    _
  $region5: #{autoencoder_forward.1} parent=0 // pred_fallthru
    _
  // Predicated region
  $region6: #{autoencoder_forward.1} parent=0 // pred_check
    _
  $region7: #{autoencoder_forward.1} parent=0 // pred_check_branch
    %13 = sbr.rel (0) target = $region9
  $region8: #{autoencoder_forward.1} parent=0 // pred_region
    _
  $region9: #{autoencoder_forward.1} parent=0 // pred_fallthru
    _
  // Predicated region
  $region10: #{autoencoder_forward.1} parent=0 // pred_check
    _
  $region11: #{autoencoder_forward.1} parent=0 // pred_check_branch
    %15 = sbr.rel (0) target = $region13
  $region12: #{autoencoder_forward.1} parent=0 // pred_region
    _
  $region13: #{autoencoder_forward.1} parent=0 // pred_fallthru
    _
  // Predicated region
  $region14: #{autoencoder_forward.1} parent=0 // pred_check
    _
  $region15: #{autoencoder_forward.1} parent=0 // pred_check_branch
    %17 = sbr.rel (0) target = $region17
  $region16: #{autoencoder_forward.1} parent=0 // pred_region
    _
  $region17: #{autoencoder_forward.1} parent=0 // pred_fallthru
    _
  // Predicated region
  $region18: #{autoencoder_forward.1} parent=0 // pred_check
    _
  $region19: #{autoencoder_forward.1} parent=0 // pred_check_branch
    %19 = sbr.rel (0) target = $region21
  $region20: #{autoencoder_forward.1} parent=0 // pred_region
    _
  $region21: #{autoencoder_forward.1} parent=0 // pred_fallthru
    _
  %v20 = vld [vmem:[%s0] sm:$0x3]
  %v21 = vld [vmem:[%s1] sm:$0xff]
  %v22 = vld [vmem:[%s1 + $0x8] sm:$0xff]
  %v23 = vld [vmem:[%s1 + $0x10] sm:$0xff]
  %v24 = vld [vmem:[%s1 + $0x18] sm:$0xff]
  %v25 = vld [vmem:[%s1 + $0x20] sm:$0xff]
  %v26 = vld [vmem:[%s1 + $0x28] sm:$0xff]
  %v27 = vld [vmem:[%s1 + $0x30] sm:$0xff]
  %v28 = vld [vmem:[%s1 + $0x38] sm:$0xff]
  %v29 = vld [vmem:[%s1 + $0x40] sm:$0xff]
  %v30 = vld [vmem:[%s1 + $0x48] sm:$0xff]
  %v31 = vld [vmem:[%s1 + $0x50] sm:$0xff]
  %v32 = vld [vmem:[%s1 + $0x58] sm:$0xff]
  %v33 = vld [vmem:[%s1 + $0x60] sm:$0xff]
  %v34 = vld [vmem:[%s1 + $0x68] sm:$0xff]
  %v35 = vld [vmem:[%s1 + $0x70] sm:$0xff]
  %v36 = vld [vmem:[%s1 + $0x78] sm:$0xff]
  %v37 = vld [vmem:[%s2] sm:$0x1]
  %v39 = vperm.slane %v37, 0
  %41 = vmatpush.msra.mxu0 %v36
  %42 = vmatpush.msra.mxu0 %v35
  %43 = vmatpush.msra.mxu0 %v34
  %44 = vmatpush.msra.mxu0 %v33
  %45 = vmatpush.msra.mxu0 %v32
  %46 = vmatpush.msra.mxu0 %v31
  %47 = vmatpush.msra.mxu0 %v30
  %48 = vmatpush.msra.mxu0 %v29
  %49 = vmatpush.msra.mxu0 %v28
  %50 = vmatpush.msra.mxu0 %v27
  %51 = vmatpush.msra.mxu0 %v26
  %52 = vmatpush.msra.mxu0 %v25
  %53 = vmatpush.msra.mxu0 %v24
  %54 = vmatpush.msra.mxu0 %v23
  %55 = vmatpush.msra.mxu0 %v22
  %56 = vmatpush.msra.mxu0 %v21
  %57 = vmatmul.f32.gmra.mxu0 %v20
  %v58 = vpop.f32.mrf.mxu0
  %v59 = vadd.f32 %v39, %v58
  %60 = vdwg.mxu0
  %v61 = vmax.f32 %v59, 0.0
  %v62 = vld [vmem:[%s3] sm:$0xff]
  %v63 = vld [vmem:[%s3 + $0x8] sm:$0xff]
  %v64 = vld [vmem:[%s3 + $0x10] sm:$0xff]
  %v65 = vld [vmem:[%s3 + $0x18] sm:$0xff]
  %v66 = vld [vmem:[%s3 + $0x20] sm:$0xff]
  %v67 = vld [vmem:[%s3 + $0x28] sm:$0xff]
  %v68 = vld [vmem:[%s3 + $0x30] sm:$0xff]
  %v69 = vld [vmem:[%s3 + $0x38] sm:$0xff]
  %v70 = vld [vmem:[%s3 + $0x40] sm:$0xff]
  %v71 = vld [vmem:[%s3 + $0x48] sm:$0xff]
  %v72 = vld [vmem:[%s4] sm:$0x1]
  %v74 = vperm.slane %v72, 0
  %vm76 = vcmask 654336
  %v78 = vsel %vm76, %v61, 0
  %80 = vmatpush.msra.mxu0 0.0
  %81 = vmatpush.msra.mxu0 0.0
  %82 = vmatpush.msra.mxu0 0.0
  %83 = vmatpush.msra.mxu0 0.0
  %84 = vmatpush.msra.mxu0 0.0
  %85 = vmatpush.msra.mxu0 0.0
  %86 = vmatpush.msra.mxu0 %v71
  %87 = vmatpush.msra.mxu0 %v70
  %88 = vmatpush.msra.mxu0 %v69
  %89 = vmatpush.msra.mxu0 %v68
  %90 = vmatpush.msra.mxu0 %v67
  %91 = vmatpush.msra.mxu0 %v66
  %92 = vmatpush.msra.mxu0 %v65
  %93 = vmatpush.msra.mxu0 %v64
  %94 = vmatpush.msra.mxu0 %v63
  %95 = vmatpush.msra.mxu0 %v62
  %96 = vmatmul.f32.gmra.mxu0 %v78
  %v97 = vpop.f32.mrf.mxu0
  %v98 = vadd.f32 %v74, %v97
  %99 = vdwg.mxu0
  %v100 = vtanh.pop %v98
  %101 = vst [vmem:[%s5] sm:$0x3] %v100
  // Predicated region
  $region22: #{autoencoder_forward.1} parent=0 // pred_check
    _
  $region23: #{autoencoder_forward.1} parent=0 // pred_check_branch
    %103 = sbr.rel (0) target = $region25
  $region24: #{autoencoder_forward.1} parent=0 // pred_region
    _
  $region25: #{autoencoder_forward.1} parent=0 // pred_fallthru
    _
  // Predicated region
  $region26: #{autoencoder_forward.1} parent=0 // pred_check
    _
  $region27: #{autoencoder_forward.1} parent=0 // pred_check_branch
    %105 = sbr.rel (0) target = $region29
  $region28: #{autoencoder_forward.1} parent=0 // pred_region
    _
  $region29: #{autoencoder_forward.1} parent=0 // pred_fallthru
    _

</llo_original>
